<compile_context>
chip_gen: v5e
topology: v5e:2x2
jax: 0.10.0
libtpu: 0.0.40
codegen_flags: <defaults>
</compile_context>

<pallas_src>
import functools

import jax
import jax.numpy as jnp
from jax.experimental import pallas as pl
from jax.experimental.pallas import tpu as pltpu

SMOOTH = 1.0
LANES = 128
SUBLANES = 8


def _round_up(x, m):
    return ((x + m - 1) // m) * m


def _make_dice_kernel(tile_rows, total_rows, mask_needed):
    """Builds a kernel producing per-block (8, 128) partial sums.

    p_ref, t_ref : (tile_rows, 128) VMEM tiles of the flattened inputs.
    inter_ref    : (1, 8, 128) VMEM output block accumulating sum(p * t).
    sum_ref      : (1, 8, 128) VMEM output block accumulating sum(p + t).
    """

    def kernel(p_ref, t_ref, inter_ref, sum_ref):
        p = p_ref[...].astype(jnp.float32)
        t = t_ref[...].astype(jnp.float32)

        if mask_needed:
            # Last block overruns the (rows, 128) slab; rows past `total_rows`
            # contain undefined data and must be zeroed before accumulating.
            row = pl.program_id(0) * tile_rows + jax.lax.broadcasted_iota(
                jnp.int32, (tile_rows, LANES), 0
            )
            valid = row < total_rows
            zero = jnp.float32(0.0)
            p = jnp.where(valid, p, zero)
            t = jnp.where(valid, t, zero)

        groups = tile_rows // SUBLANES
        # Pure VPU folds: collapse the tile onto an (8, 128) vreg-shaped
        # partial; the expensive cross-lane reduce happens once, in the
        # wrapper, over a tiny array.
        prod = (p * t).reshape(groups, SUBLANES, LANES).sum(axis=0)
        both = (p + t).reshape(groups, SUBLANES, LANES).sum(axis=0)
        inter_ref[0] = prod
        sum_ref[0] = both

    return kernel


@functools.partial(jax.jit, static_argnames=("tile_rows",))
def dice_loss(y_pred, y_true, *, tile_rows=2048):
    assert y_pred.shape == y_true.shape, "y_pred and y_true must match in shape"
    assert tile_rows % SUBLANES == 0, "tile_rows must be a multiple of 8"

    p_flat = jnp.ravel(y_pred)
    t_flat = jnp.ravel(y_true)
    n = p_flat.shape[0]

    # View as a lane-dense (rows, 128) slab with rows a multiple of 8.  For
    # typical NCHW activations (n % 1024 == 0) the pad is skipped entirely, so
    # there is no extra HBM copy; only odd sizes pay for a zero pad.
    padded_n = _round_up(n, SUBLANES * LANES)
    pad = padded_n - n
    if pad:
        p_flat = jnp.pad(p_flat, (0, pad))
        t_flat = jnp.pad(t_flat, (0, pad))

    rows = padded_n // LANES
    p2d = p_flat.reshape(rows, LANES)
    t2d = t_flat.reshape(rows, LANES)

    # Clamp the tile to the actual slab for small inputs (full-array block is
    # always a legal block shape).
    tile_rows_eff = min(tile_rows, rows)
    num_blocks = (rows + tile_rows_eff - 1) // tile_rows_eff
    mask_needed = (rows % tile_rows_eff) != 0

    kernel = _make_dice_kernel(tile_rows_eff, rows, mask_needed)

    part_shape = jax.ShapeDtypeStruct((num_blocks, SUBLANES, LANES), jnp.float32)
    inter_part, sum_part = pl.pallas_call(
        kernel,
        out_shape=(part_shape, part_shape),
        grid_spec=pltpu.PrefetchScalarGridSpec(
            num_scalar_prefetch=0,
            grid=(num_blocks,),
            in_specs=[
                pl.BlockSpec((tile_rows_eff, LANES), lambda i: (i, 0)),
                pl.BlockSpec((tile_rows_eff, LANES), lambda i: (i, 0)),
            ],
            out_specs=(
                pl.BlockSpec((1, SUBLANES, LANES), lambda i: (i, 0, 0)),
                pl.BlockSpec((1, SUBLANES, LANES), lambda i: (i, 0, 0)),
            ),
        ),
        compiler_params=pltpu.CompilerParams(
            # No carried state across the grid -> safe to shard across both
            # TensorCores on v7x; a plain sequential loop on v5e/v6e.
            dimension_semantics=("parallel",),
        ),
    )(p2d, t2d)

    # Tiny final reduction + scalar DSC math (negligible vs the streamed bytes).
    intersection = jnp.sum(inter_part)
    total = jnp.sum(sum_part)  # == sum(p) + sum(t)
    dsc = (2.0 * intersection + jnp.float32(SMOOTH)) / (total + jnp.float32(SMOOTH))
    return jnp.float32(1.0) - dsc


def dice_loss_ref(y_pred, y_true):
    p = jnp.ravel(y_pred).astype(jnp.float32)
    t = jnp.ravel(y_true).astype(jnp.float32)
    intersection = jnp.sum(p * t)
    dsc = (2.0 * intersection + SMOOTH) / (jnp.sum(p) + jnp.sum(t) + SMOOTH)
    return 1.0 - dsc


if __name__ == "__main__":
    key = jax.random.PRNGKey(0)
    k1, k2 = jax.random.split(key)

    # NCHW-style inputs: batch=2, channels=4, spatial=16x16.
    shape = (2, 4, 16, 16)
    # y_pred in [0, 1] (e.g. sigmoid outputs), y_true a binary mask.
    y_pred = jax.nn.sigmoid(jax.random.normal(k1, shape, dtype=jnp.float32))
    y_true = (jax.random.uniform(k2, shape, dtype=jnp.float32) > 0.5).astype(
        jnp.float32
    )

    out = dice_loss(y_pred, y_true)
    out = jax.block_until_ready(out)

    ref = dice_loss_ref(y_pred, y_true)
    assert jnp.allclose(out, ref, atol=1e-5, rtol=1e-5), (out, ref)

    print("KERNEL_OK")
</pallas_src>

<mosaic_0001>
module attributes {stable_mosaic.version = 11 : i64} {
  func.func @kernel(%arg0: i32, %arg1: memref<16x128xf32, #tpu.memory_space<vmem>>, %arg2: memref<16x128xf32, #tpu.memory_space<vmem>>, %arg3: memref<1x8x128xf32, #tpu.memory_space<vmem>>, %arg4: memref<1x8x128xf32, #tpu.memory_space<vmem>>) attributes {dimension_semantics = [#tpu.dimension_semantics<parallel>], iteration_bounds = array<i64: 1>, scalar_prefetch = 0 : i64, scratch_operands = 0 : i64, tpu.core_type = #tpu.core_type<tc>, window_params = [{transform_indices = @transform_0, window_bounds = array<i64: 16, 128>}, {transform_indices = @transform_1, window_bounds = array<i64: 16, 128>}, {transform_indices = @transform_2, window_bounds = array<i64: 1, 8, 128>}, {transform_indices = @transform_3, window_bounds = array<i64: 1, 8, 128>}]} {
    %c0 = arith.constant 0 : index
    %c0_0 = arith.constant 0 : index
    %0 = vector.load %arg1[%c0, %c0_0] : memref<16x128xf32, #tpu.memory_space<vmem>>, vector<16x128xf32>
    %c0_1 = arith.constant 0 : index
    %c0_2 = arith.constant 0 : index
    %1 = vector.load %arg2[%c0_1, %c0_2] : memref<16x128xf32, #tpu.memory_space<vmem>>, vector<16x128xf32>
    %2 = arith.mulf %0, %1 : vector<16x128xf32>
    %3 = vector.shape_cast %2 : vector<16x128xf32> to vector<2x8x128xf32>
    %cst = arith.constant dense<0.000000e+00> : vector<8x128xf32>
    %4 = vector.multi_reduction <add>, %3, %cst [0] : vector<2x8x128xf32> to vector<8x128xf32>
    %5 = arith.addf %0, %1 : vector<16x128xf32>
    %6 = vector.shape_cast %5 : vector<16x128xf32> to vector<2x8x128xf32>
    %cst_3 = arith.constant dense<0.000000e+00> : vector<8x128xf32>
    %7 = vector.multi_reduction <add>, %6, %cst_3 [0] : vector<2x8x128xf32> to vector<8x128xf32>
    %c0_4 = arith.constant 0 : index
    %c0_5 = arith.constant 0 : index
    %c0_6 = arith.constant 0 : index
    %8 = vector.load %arg3[%c0_4, %c0_5, %c0_6] : memref<1x8x128xf32, #tpu.memory_space<vmem>>, vector<1x8x128xf32>
    %9 = vector.shape_cast %8 : vector<1x8x128xf32> to vector<8x128xf32>
    %10 = vector.shape_cast %4 : vector<8x128xf32> to vector<1x8x128xf32>
    tpu.vector_store %arg3[%c0_4, %c0_5, %c0_6], %10 {strides = array<i32>} : memref<1x8x128xf32, #tpu.memory_space<vmem>>, vector<1x8x128xf32>,
    %c0_7 = arith.constant 0 : index
    %c0_8 = arith.constant 0 : index
    %c0_9 = arith.constant 0 : index
    %11 = vector.load %arg4[%c0_7, %c0_8, %c0_9] : memref<1x8x128xf32, #tpu.memory_space<vmem>>, vector<1x8x128xf32>
    %12 = vector.shape_cast %11 : vector<1x8x128xf32> to vector<8x128xf32>
    %13 = vector.shape_cast %7 : vector<8x128xf32> to vector<1x8x128xf32>
    tpu.vector_store %arg4[%c0_7, %c0_8, %c0_9], %13 {strides = array<i32>} : memref<1x8x128xf32, #tpu.memory_space<vmem>>, vector<1x8x128xf32>,
    return
  }
  func.func @transform_0(%arg0: i32) -> (i32, i32) {
    %c0_i32 = arith.constant 0 : i32
    %c0_i32_0 = arith.constant 0 : i32
    return %arg0, %c0_i32 : i32, i32
  }
  func.func @transform_1(%arg0: i32) -> (i32, i32) {
    %c0_i32 = arith.constant 0 : i32
    %c0_i32_0 = arith.constant 0 : i32
    return %arg0, %c0_i32 : i32, i32
  }
  func.func @transform_2(%arg0: i32) -> (i32, i32, i32) {
    %c0_i32 = arith.constant 0 : i32
    %c0_i32_0 = arith.constant 0 : i32
    %c0_i32_1 = arith.constant 0 : i32
    return %arg0, %c0_i32, %c0_i32_0 : i32, i32, i32
  }
  func.func @transform_3(%arg0: i32) -> (i32, i32, i32) {
    %c0_i32 = arith.constant 0 : i32
    %c0_i32_0 = arith.constant 0 : i32
    %c0_i32_1 = arith.constant 0 : i32
    return %arg0, %c0_i32, %c0_i32_0 : i32, i32, i32
  }
}

</mosaic_0001>

<llo_original>
// kernel: dice_loss.1
$region0: #{dice_loss.1}
  #allocation0 [shape = 'u32[]', space=smem, size = 0x4, offset = 0x4, fixed_abs, tag = 'smem constant byte address 0x4 - core index']
  #allocation1 [shape = 'u32[72,128]{1,0:T(1,128)}', space=vmem, size = 0x9000, scoped, tag = 'internal scratch']
  %s0 = inlined_call_operand.vmem [shape: f32[16,128], index: 0, kind: input, shape index: {}]
  %s1 = inlined_call_operand.vmem [shape: f32[16,128], index: 1, kind: input, shape index: {}]
  %s2 = inlined_call_operand.vmem [shape: f32[1,8,128], index: 2, kind: output, shape index: {0}]
  %s3 = inlined_call_operand.vmem [shape: f32[1,8,128], index: 3, kind: output, shape index: {1}]
  %4 = xla_tuple %s2, %s3
  %s5 = sld [smem:[#allocation0]]
  $region26: #{dice_loss.1} parent=0
    _
  %s7 = ssub.s32 1, %s5
  %s8 = scalar_select 0, %s7, %s5
  // Predicated region
  $region2: #{dice_loss.1} parent=0 // pred_check
    _
  $region3: #{dice_loss.1} parent=0 // pred_check_branch
    %10 = sbr.rel (0) target = $region5
  $region4: #{dice_loss.1} parent=0 // pred_region
    _
  $region5: #{dice_loss.1} parent=0 // pred_fallthru
    _
  // Predicated region
  $region6: #{dice_loss.1} parent=0 // pred_check
    _
  $region7: #{dice_loss.1} parent=0 // pred_check_branch
    %12 = sbr.rel (0) target = $region9
  $region8: #{dice_loss.1} parent=0 // pred_region
    _
  $region9: #{dice_loss.1} parent=0 // pred_fallthru
    _
  %v13 = vld [vmem:[%s0] sm:$0xff]
  %v14 = vld [vmem:[%s0 + $0x8] sm:$0xff]
  %v15 = vld [vmem:[%s1] sm:$0xff]
  %v16 = vld [vmem:[%s1 + $0x8] sm:$0xff]
  %v17 = vmul.f32 %v13, %v15
  %v18 = vmul.f32 %v14, %v16
  %v19 = vadd.f32 %v17, %v18
  %v20 = vadd.f32 %v13, %v15
  %v21 = vadd.f32 %v14, %v16
  %v22 = vadd.f32 %v20, %v21
  %23 = vst [vmem:[%s2] sm:$0xff] %v19
  %24 = vst [vmem:[%s3] sm:$0xff] %v22
  // Predicated region
  $region10: #{dice_loss.1} parent=0 // pred_check
    _
  $region11: #{dice_loss.1} parent=0 // pred_check_branch
    %26 = sbr.rel (0) target = $region13
  $region12: #{dice_loss.1} parent=0 // pred_region
    _
  $region13: #{dice_loss.1} parent=0 // pred_fallthru
    _
  // Predicated region
  $region14: #{dice_loss.1} parent=0 // pred_check
    _
  $region15: #{dice_loss.1} parent=0 // pred_check_branch
    %28 = sbr.rel (0) target = $region17
  $region16: #{dice_loss.1} parent=0 // pred_region
    _
  $region17: #{dice_loss.1} parent=0 // pred_fallthru
    _
  // Predicated region
  $region18: #{dice_loss.1} parent=0 // pred_check
    _
  $region19: #{dice_loss.1} parent=0 // pred_check_branch
    %30 = sbr.rel (0) target = $region21
  $region20: #{dice_loss.1} parent=0 // pred_region
    _
  $region21: #{dice_loss.1} parent=0 // pred_fallthru
    _
  // Predicated region
  $region22: #{dice_loss.1} parent=0 // pred_check
    _
  $region23: #{dice_loss.1} parent=0 // pred_check_branch
    %32 = sbr.rel (0) target = $region25
  $region24: #{dice_loss.1} parent=0 // pred_region
    _
  $region25: #{dice_loss.1} parent=0 // pred_fallthru
    _

</llo_original>
